<compile_context>
chip_gen: v5e
topology: v5e:2x2
jax: 0.10.0
libtpu: 0.0.40
codegen_flags: <defaults>
</compile_context>

<pallas_src>
import functools

import jax
import jax.numpy as jnp
from jax import lax
from jax.experimental import pallas as pl
from jax.experimental.pallas import tpu as pltpu


def _mhsa_kernel(x_ref, wqk_ref, bqk_ref, wvo_ref, bout_ref, o_ref,
                 *, batch, seq, num_heads, head_dim):
    """Fused multi-head self-attention for ALL batches in one grid step.

    x_ref:    (B*N, D)   flattened input slab
    wqk_ref:  (D, 2*D)   block-diag fused Q|K weight (1/sqrt(Hd) folded into Q)
    bqk_ref:  (1, 2*D)   fused Q|K bias (scale folded into Q bias)
    wvo_ref:  (D, H*D)   block value->output weight, VO_h = Wv.T @ Wout_h
    bout_ref: (1, D)     b_out + sum_h bv @ Wout_h  (softmax rows sum to 1)
    o_ref:    (B*N, D)
    """
    D = num_heads * head_dim

    x = x_ref[...].astype(jnp.float32)                               # (B*N, D)

    # One MXU push for the (pre-scaled) q and k of every head and batch.
    qk = jnp.dot(x, wqk_ref[...],
                 preferred_element_type=jnp.float32) + bqk_ref[...]  # (B*N, 2D)
    q = qk[:, 0 * D:1 * D]
    k = qk[:, 1 * D:2 * D]

    # One MXU push for the fused value->output path of every head and batch.
    vo = jnp.dot(x, wvo_ref[...],
                 preferred_element_type=jnp.float32)                 # (B*N, H*D)

    # Static (batch, head) loop: tiny (N, N) attention blocks accumulated
    # directly in output space -- no head concatenate, no final projection.
    for b in range(batch):
        r0 = b * seq
        q_b = q[r0:r0 + seq, :]
        k_b = k[r0:r0 + seq, :]
        vo_b = vo[r0:r0 + seq, :]

        acc = jnp.zeros((seq, D), jnp.float32)
        for h in range(num_heads):
            c0 = h * head_dim
            # scores = q_h @ k_h^T (no explicit transpose; MXU-native).
            s = lax.dot_general(q_b[:, c0:c0 + head_dim],
                                k_b[:, c0:c0 + head_dim],
                                (((1,), (1,)), ((), ())),
                                preferred_element_type=jnp.float32)  # (N, N)
            # Numerically-stable, EXACT softmax (approx reciprocal dropped).
            s = s - jnp.max(s, axis=-1, keepdims=True)
            p = jnp.exp(s)
            p = p / jnp.sum(p, axis=-1, keepdims=True)
            acc = acc + jnp.dot(p, vo_b[:, h * D:(h + 1) * D],
                                preferred_element_type=jnp.float32)

        o_ref[pl.ds(r0, seq), :] = (acc + bout_ref[...]).astype(o_ref.dtype)


def prepare_params(params, num_heads):
    """Hoisted one-time weight prep: block-diag QK fusion + value/output fold."""
    hi = lax.Precision.HIGHEST
    head_dim = params["wq"].shape[0]
    D = num_heads * head_dim
    scale = 1.0 / jnp.sqrt(jnp.float32(head_dim))
    eye = jnp.eye(num_heads, dtype=jnp.float32)

    # PyTorch nn.Linear stores (out, in) and computes y = x @ W.T + b.
    # Block-diagonal per-head weights: one (B*N,D)@(D,2D) matmul applies the
    # shared head weights to every Hd-wide lane chunk at once.
    wq_bd = jnp.kron(eye, params["wq"].T) * scale            # scale folded into Q
    wk_bd = jnp.kron(eye, params["wk"].T)
    w_qk = jnp.concatenate([wq_bd, wk_bd], axis=1)           # (D, 2D)

    bq = jnp.tile(params["bq"], num_heads) * scale
    bk = jnp.tile(params["bk"], num_heads)
    b_qk = jnp.concatenate([bq, bk]).reshape(1, 2 * D)       # (1, 2D)

    # Fold the value projection into the output projection:
    #   out = sum_h P_h @ (x_h @ Wv.T) @ Wout_h + (b_out + sum_h bv @ Wout_h)
    wout_t = params["w_out"].T                               # (D, D)
    wv_t = params["wv"].T                                    # (Hd, Hd)
    cols = []
    for h in range(num_heads):
        wout_h = wout_t[h * head_dim:(h + 1) * head_dim, :]  # (Hd, D)
        vo_h = jnp.dot(wv_t, wout_h, precision=hi)           # (Hd, D)
        cols.append(jnp.concatenate([
            jnp.zeros((h * head_dim, D), jnp.float32),
            vo_h,
            jnp.zeros((D - (h + 1) * head_dim, D), jnp.float32),
        ], axis=0))                                           # (D, D)
    w_vo = jnp.concatenate(cols, axis=1)                      # (D, H*D)

    b_out = params["b_out"] + jnp.dot(jnp.tile(params["bv"], num_heads),
                                      wout_t, precision=hi)   # (D,)

    # Note: for production shapes on v6e/v7x, cast w_qk / w_vo to bf16 here
    # (keep f32 accumulation + softmax in-kernel). Neutral at these sizes.
    return {
        "w_qk": w_qk,
        "b_qk": b_qk,
        "w_vo": w_vo,
        "b_out": b_out.reshape(1, D),
        "head_dim": head_dim,
    }


def multi_head_self_attention(x, prepared, num_heads):
    B, N, D = x.shape
    head_dim = prepared["head_dim"]
    assert D == num_heads * head_dim, "input_dim must be divisible by num_heads"
    assert head_dim == num_heads, (
        "reference forward loops range(head_dim) over heads; requires head_dim == num_heads"
    )

    kernel = functools.partial(_mhsa_kernel, batch=B, seq=N,
                               num_heads=num_heads, head_dim=head_dim)

    # Single grid step: the whole problem fits VMEM many times over, so one
    # invocation avoids per-step pipeline overhead and extra DMAs.
    # (On v7x at larger B, switch back to grid=(B,) + dimension_semantics=
    # ("parallel",) to use both TensorCores.)
    x2d = x.reshape(B * N, D)
    out2d = pl.pallas_call(
        kernel,
        out_shape=jax.ShapeDtypeStruct((B * N, D), x.dtype),
        grid=(1,),
        in_specs=[
            pl.BlockSpec((B * N, D), lambda i: (0, 0)),        # x slab
            pl.BlockSpec((D, 2 * D), lambda i: (0, 0)),        # fused Q|K weight
            pl.BlockSpec((1, 2 * D), lambda i: (0, 0)),        # fused Q|K bias
            pl.BlockSpec((D, num_heads * D), lambda i: (0, 0)),# value->output weight
            pl.BlockSpec((1, D), lambda i: (0, 0)),            # folded output bias
        ],
        out_specs=pl.BlockSpec((B * N, D), lambda i: (0, 0)),
    )(x2d, prepared["w_qk"], prepared["b_qk"], prepared["w_vo"], prepared["b_out"])
    # Dropout(p=0.0) is the identity -> nothing to do.
    return out2d.reshape(B, N, D)


def init_params(key, num_heads, input_dim):
    head_dim = input_dim // num_heads
    ks = jax.random.split(key, 8)
    s_h = 1.0 / jnp.sqrt(jnp.float32(head_dim))   # nn.Linear default-ish scale
    s_d = 1.0 / jnp.sqrt(jnp.float32(input_dim))
    return {
        "wq": jax.random.uniform(ks[0], (head_dim, head_dim), jnp.float32, -s_h, s_h),
        "bq": jax.random.uniform(ks[1], (head_dim,), jnp.float32, -s_h, s_h),
        "wk": jax.random.uniform(ks[2], (head_dim, head_dim), jnp.float32, -s_h, s_h),
        "bk": jax.random.uniform(ks[3], (head_dim,), jnp.float32, -s_h, s_h),
        "wv": jax.random.uniform(ks[4], (head_dim, head_dim), jnp.float32, -s_h, s_h),
        "bv": jax.random.uniform(ks[5], (head_dim,), jnp.float32, -s_h, s_h),
        "w_out": jax.random.uniform(ks[6], (input_dim, input_dim), jnp.float32, -s_d, s_d),
        "b_out": jax.random.uniform(ks[7], (input_dim,), jnp.float32, -s_d, s_d),
    }


def _reference(x, params, num_heads):
    """Pure-JAX reference mirroring the PyTorch forward (full-precision dots)."""
    hi = lax.Precision.HIGHEST
    B, N, D = x.shape
    head_dim = D // num_heads
    xh = x.reshape(B, N, num_heads, head_dim).transpose(0, 2, 1, 3)
    outs = []
    for i in range(head_dim):  # reference loops over range(head_dim)
        h = xh[:, i, :, :]
        q = jnp.dot(h, params["wq"].T, precision=hi) + params["bq"]
        k = jnp.dot(h, params["wk"].T, precision=hi) + params["bk"]
        v = jnp.dot(h, params["wv"].T, precision=hi) + params["bv"]
        s = jnp.einsum("bnd,bmd->bnm", q, k, precision=hi) / jnp.sqrt(jnp.float32(head_dim))
        p = jax.nn.softmax(s, axis=-1)
        outs.append(jnp.einsum("bnm,bmd->bnd", p, v, precision=hi))
    concat = jnp.concatenate(outs, axis=-1)
    return jnp.dot(concat, params["w_out"].T, precision=hi) + params["b_out"]


if __name__ == "__main__":
    num_heads = 4
    head_dim = 4
    input_dim = num_heads * head_dim      # 16
    B, N = 2, 8

    key = jax.random.PRNGKey(0)
    kx, kp = jax.random.split(key)
    x = jax.random.normal(kx, (B, N, input_dim), dtype=jnp.float32)
    params = init_params(kp, num_heads, input_dim)
    prepared = prepare_params(params, num_heads)   # hoisted one-time weight prep

    out = multi_head_self_attention(x, prepared, num_heads)
    out = jax.block_until_ready(out)

    ref = _reference(x, params, num_heads)
    assert out.shape == (B, N, input_dim)
    # Exact softmax normalization -> tolerance tightened from 2e-3 to ~1e-5 scale.
    assert jnp.allclose(out, ref, atol=5e-5, rtol=5e-5), "mismatch vs JAX reference"

    print("KERNEL_OK")
</pallas_src>

<mosaic_0001>
module attributes {stable_mosaic.version = 11 : i64} {
  func.func @_mhsa_kernel(%arg0: i32, %arg1: memref<16x16xf32, #tpu.memory_space<vmem>>, %arg2: memref<16x32xf32, #tpu.memory_space<vmem>>, %arg3: memref<1x32xf32, #tpu.memory_space<vmem>>, %arg4: memref<16x64xf32, #tpu.memory_space<vmem>>, %arg5: memref<1x16xf32, #tpu.memory_space<vmem>>, %arg6: memref<16x16xf32, #tpu.memory_space<vmem>>) attributes {dimension_semantics = [#tpu.dimension_semantics<arbitrary>], iteration_bounds = array<i64: 1>, scalar_prefetch = 0 : i64, scratch_operands = 0 : i64, tpu.core_type = #tpu.core_type<tc>, window_params = [{pipeline_mode = #tpu.pipeline_mode<synchronous>, transform_indices = @transform_0, window_bounds = array<i64: 16, 16>}, {pipeline_mode = #tpu.pipeline_mode<synchronous>, transform_indices = @transform_1, window_bounds = array<i64: 16, 32>}, {pipeline_mode = #tpu.pipeline_mode<synchronous>, transform_indices = @transform_2, window_bounds = array<i64: 1, 32>}, {pipeline_mode = #tpu.pipeline_mode<synchronous>, transform_indices = @transform_3, window_bounds = array<i64: 16, 64>}, {pipeline_mode = #tpu.pipeline_mode<synchronous>, transform_indices = @transform_4, window_bounds = array<i64: 1, 16>}, {pipeline_mode = #tpu.pipeline_mode<synchronous>, transform_indices = @transform_5, window_bounds = array<i64: 16, 16>}]} {
    %c0 = arith.constant 0 : index
    %c0_0 = arith.constant 0 : index
    %0 = vector.load %arg1[%c0, %c0_0] : memref<16x16xf32, #tpu.memory_space<vmem>>, vector<16x16xf32>
    %c0_1 = arith.constant 0 : index
    %c0_2 = arith.constant 0 : index
    %1 = vector.load %arg2[%c0_1, %c0_2] : memref<16x32xf32, #tpu.memory_space<vmem>>, vector<16x32xf32>
    %cst = arith.constant dense<0.000000e+00> : vector<16x32xf32>
    %2 = tpu.matmul %0, %1, %cst {dimension_numbers = #tpu.dot_dimension_numbers<[1], [0], [0], [1], [0, 0, 1, 1], [], []>} : vector<16x16xf32>, vector<16x32xf32>, vector<16x32xf32> -> vector<16x32xf32>
    %c0_3 = arith.constant 0 : index
    %c0_4 = arith.constant 0 : index
    %3 = vector.load %arg3[%c0_3, %c0_4] : memref<1x32xf32, #tpu.memory_space<vmem>>, vector<1x32xf32>
    %4 = vector.broadcast %3 : vector<1x32xf32> to vector<16x32xf32>
    %5 = arith.addf %2, %4 : vector<16x32xf32>
    %6 = vector.extract_strided_slice %5 {offsets = [0, 0], sizes = [16, 16], strides = [1, 1]} : vector<16x32xf32> to vector<16x16xf32>
    %7 = vector.extract_strided_slice %5 {offsets = [0, 16], sizes = [16, 16], strides = [1, 1]} : vector<16x32xf32> to vector<16x16xf32>
    %c0_5 = arith.constant 0 : index
    %c0_6 = arith.constant 0 : index
    %8 = vector.load %arg4[%c0_5, %c0_6] : memref<16x64xf32, #tpu.memory_space<vmem>>, vector<16x64xf32>
    %cst_7 = arith.constant dense<0.000000e+00> : vector<16x64xf32>
    %9 = tpu.matmul %0, %8, %cst_7 {dimension_numbers = #tpu.dot_dimension_numbers<[1], [0], [0], [1], [0, 0, 1, 1], [], []>} : vector<16x16xf32>, vector<16x64xf32>, vector<16x64xf32> -> vector<16x64xf32>
    %10 = vector.extract_strided_slice %6 {offsets = [0, 0], sizes = [8, 16], strides = [1, 1]} : vector<16x16xf32> to vector<8x16xf32>
    %11 = vector.extract_strided_slice %7 {offsets = [0, 0], sizes = [8, 16], strides = [1, 1]} : vector<16x16xf32> to vector<8x16xf32>
    %12 = vector.extract_strided_slice %9 {offsets = [0, 0], sizes = [8, 64], strides = [1, 1]} : vector<16x64xf32> to vector<8x64xf32>
    %cst_8 = arith.constant 0.000000e+00 : f32
    %13 = vector.broadcast %cst_8 : f32 to vector<8x16xf32>
    %14 = vector.extract_strided_slice %10 {offsets = [0, 0], sizes = [8, 4], strides = [1, 1]} : vector<8x16xf32> to vector<8x4xf32>
    %15 = vector.extract_strided_slice %11 {offsets = [0, 0], sizes = [8, 4], strides = [1, 1]} : vector<8x16xf32> to vector<8x4xf32>
    %cst_9 = arith.constant dense<0.000000e+00> : vector<8x8xf32>
    %16 = tpu.matmul %14, %15, %cst_9 {dimension_numbers = #tpu.dot_dimension_numbers<[1], [1], [0], [0], [0, 0, 1, 0], [], []>} : vector<8x4xf32>, vector<8x4xf32>, vector<8x8xf32> -> vector<8x8xf32>
    %cst_10 = arith.constant dense<0xFF800000> : vector<8xf32>
    %17 = vector.multi_reduction <maximumf>, %16, %cst_10 [1] : vector<8x8xf32> to vector<8xf32>
    %18 = vector.shape_cast %17 : vector<8xf32> to vector<8x1xf32>
    %19 = vector.broadcast %18 : vector<8x1xf32> to vector<8x8xf32>
    %20 = arith.subf %16, %19 : vector<8x8xf32>
    %21 = math.exp %20 : vector<8x8xf32>
    %cst_11 = arith.constant dense<0.000000e+00> : vector<8xf32>
    %22 = vector.multi_reduction <add>, %21, %cst_11 [1] : vector<8x8xf32> to vector<8xf32>
    %23 = vector.shape_cast %22 : vector<8xf32> to vector<8x1xf32>
    %24 = vector.broadcast %23 : vector<8x1xf32> to vector<8x8xf32>
    %25 = arith.divf %21, %24 : vector<8x8xf32>
    %26 = vector.extract_strided_slice %12 {offsets = [0, 0], sizes = [8, 16], strides = [1, 1]} : vector<8x64xf32> to vector<8x16xf32>
    %cst_12 = arith.constant dense<0.000000e+00> : vector<8x16xf32>
    %27 = tpu.matmul %25, %26, %cst_12 {dimension_numbers = #tpu.dot_dimension_numbers<[1], [0], [0], [1], [0, 0, 1, 1], [], []>} : vector<8x8xf32>, vector<8x16xf32>, vector<8x16xf32> -> vector<8x16xf32>
    %28 = arith.addf %13, %27 : vector<8x16xf32>
    %29 = vector.extract_strided_slice %10 {offsets = [0, 4], sizes = [8, 4], strides = [1, 1]} : vector<8x16xf32> to vector<8x4xf32>
    %30 = vector.extract_strided_slice %11 {offsets = [0, 4], sizes = [8, 4], strides = [1, 1]} : vector<8x16xf32> to vector<8x4xf32>
    %cst_13 = arith.constant dense<0.000000e+00> : vector<8x8xf32>
    %31 = tpu.matmul %29, %30, %cst_13 {dimension_numbers = #tpu.dot_dimension_numbers<[1], [1], [0], [0], [0, 0, 1, 0], [], []>} : vector<8x4xf32>, vector<8x4xf32>, vector<8x8xf32> -> vector<8x8xf32>
    %cst_14 = arith.constant dense<0xFF800000> : vector<8xf32>
    %32 = vector.multi_reduction <maximumf>, %31, %cst_14 [1] : vector<8x8xf32> to vector<8xf32>
    %33 = vector.shape_cast %32 : vector<8xf32> to vector<8x1xf32>
    %34 = vector.broadcast %33 : vector<8x1xf32> to vector<8x8xf32>
    %35 = arith.subf %31, %34 : vector<8x8xf32>
    %36 = math.exp %35 : vector<8x8xf32>
    %cst_15 = arith.constant dense<0.000000e+00> : vector<8xf32>
    %37 = vector.multi_reduction <add>, %36, %cst_15 [1] : vector<8x8xf32> to vector<8xf32>
    %38 = vector.shape_cast %37 : vector<8xf32> to vector<8x1xf32>
    %39 = vector.broadcast %38 : vector<8x1xf32> to vector<8x8xf32>
    %40 = arith.divf %36, %39 : vector<8x8xf32>
    %41 = vector.extract_strided_slice %12 {offsets = [0, 16], sizes = [8, 16], strides = [1, 1]} : vector<8x64xf32> to vector<8x16xf32>
    %cst_16 = arith.constant dense<0.000000e+00> : vector<8x16xf32>
    %42 = tpu.matmul %40, %41, %cst_16 {dimension_numbers = #tpu.dot_dimension_numbers<[1], [0], [0], [1], [0, 0, 1, 1], [], []>} : vector<8x8xf32>, vector<8x16xf32>, vector<8x16xf32> -> vector<8x16xf32>
    %43 = arith.addf %28, %42 : vector<8x16xf32>
    %44 = vector.extract_strided_slice %10 {offsets = [0, 8], sizes = [8, 4], strides = [1, 1]} : vector<8x16xf32> to vector<8x4xf32>
    %45 = vector.extract_strided_slice %11 {offsets = [0, 8], sizes = [8, 4], strides = [1, 1]} : vector<8x16xf32> to vector<8x4xf32>
    %cst_17 = arith.constant dense<0.000000e+00> : vector<8x8xf32>
    %46 = tpu.matmul %44, %45, %cst_17 {dimension_numbers = #tpu.dot_dimension_numbers<[1], [1], [0], [0], [0, 0, 1, 0], [], []>} : vector<8x4xf32>, vector<8x4xf32>, vector<8x8xf32> -> vector<8x8xf32>
    %cst_18 = arith.constant dense<0xFF800000> : vector<8xf32>
    %47 = vector.multi_reduction <maximumf>, %46, %cst_18 [1] : vector<8x8xf32> to vector<8xf32>
    %48 = vector.shape_cast %47 : vector<8xf32> to vector<8x1xf32>
    %49 = vector.broadcast %48 : vector<8x1xf32> to vector<8x8xf32>
    %50 = arith.subf %46, %49 : vector<8x8xf32>
    %51 = math.exp %50 : vector<8x8xf32>
    %cst_19 = arith.constant dense<0.000000e+00> : vector<8xf32>
    %52 = vector.multi_reduction <add>, %51, %cst_19 [1] : vector<8x8xf32> to vector<8xf32>
    %53 = vector.shape_cast %52 : vector<8xf32> to vector<8x1xf32>
    %54 = vector.broadcast %53 : vector<8x1xf32> to vector<8x8xf32>
    %55 = arith.divf %51, %54 : vector<8x8xf32>
    %56 = vector.extract_strided_slice %12 {offsets = [0, 32], sizes = [8, 16], strides = [1, 1]} : vector<8x64xf32> to vector<8x16xf32>
    %cst_20 = arith.constant dense<0.000000e+00> : vector<8x16xf32>
    %57 = tpu.matmul %55, %56, %cst_20 {dimension_numbers = #tpu.dot_dimension_numbers<[1], [0], [0], [1], [0, 0, 1, 1], [], []>} : vector<8x8xf32>, vector<8x16xf32>, vector<8x16xf32> -> vector<8x16xf32>
    %58 = arith.addf %43, %57 : vector<8x16xf32>
    %59 = vector.extract_strided_slice %10 {offsets = [0, 12], sizes = [8, 4], strides = [1, 1]} : vector<8x16xf32> to vector<8x4xf32>
    %60 = vector.extract_strided_slice %11 {offsets = [0, 12], sizes = [8, 4], strides = [1, 1]} : vector<8x16xf32> to vector<8x4xf32>
    %cst_21 = arith.constant dense<0.000000e+00> : vector<8x8xf32>
    %61 = tpu.matmul %59, %60, %cst_21 {dimension_numbers = #tpu.dot_dimension_numbers<[1], [1], [0], [0], [0, 0, 1, 0], [], []>} : vector<8x4xf32>, vector<8x4xf32>, vector<8x8xf32> -> vector<8x8xf32>
    %cst_22 = arith.constant dense<0xFF800000> : vector<8xf32>
    %62 = vector.multi_reduction <maximumf>, %61, %cst_22 [1] : vector<8x8xf32> to vector<8xf32>
    %63 = vector.shape_cast %62 : vector<8xf32> to vector<8x1xf32>
    %64 = vector.broadcast %63 : vector<8x1xf32> to vector<8x8xf32>
    %65 = arith.subf %61, %64 : vector<8x8xf32>
    %66 = math.exp %65 : vector<8x8xf32>
    %cst_23 = arith.constant dense<0.000000e+00> : vector<8xf32>
    %67 = vector.multi_reduction <add>, %66, %cst_23 [1] : vector<8x8xf32> to vector<8xf32>
    %68 = vector.shape_cast %67 : vector<8xf32> to vector<8x1xf32>
    %69 = vector.broadcast %68 : vector<8x1xf32> to vector<8x8xf32>
    %70 = arith.divf %66, %69 : vector<8x8xf32>
    %71 = vector.extract_strided_slice %12 {offsets = [0, 48], sizes = [8, 16], strides = [1, 1]} : vector<8x64xf32> to vector<8x16xf32>
    %cst_24 = arith.constant dense<0.000000e+00> : vector<8x16xf32>
    %72 = tpu.matmul %70, %71, %cst_24 {dimension_numbers = #tpu.dot_dimension_numbers<[1], [0], [0], [1], [0, 0, 1, 1], [], []>} : vector<8x8xf32>, vector<8x16xf32>, vector<8x16xf32> -> vector<8x16xf32>
    %73 = arith.addf %58, %72 : vector<8x16xf32>
    %c0_25 = arith.constant 0 : index
    %c0_26 = arith.constant 0 : index
    %74 = vector.load %arg5[%c0_25, %c0_26] : memref<1x16xf32, #tpu.memory_space<vmem>>, vector<1x16xf32>
    %75 = vector.broadcast %74 : vector<1x16xf32> to vector<8x16xf32>
    %76 = arith.addf %73, %75 : vector<8x16xf32>
    %c0_27 = arith.constant 0 : index
    %c0_28 = arith.constant 0 : index
    %77 = vector.load %arg6[%c0_27, %c0_28] : memref<16x16xf32, #tpu.memory_space<vmem>>, vector<8x16xf32>
    tpu.vector_store %arg6[%c0_27, %c0_28], %76 {strides = array<i32>} : memref<16x16xf32, #tpu.memory_space<vmem>>, vector<8x16xf32>,
    %78 = vector.extract_strided_slice %6 {offsets = [8, 0], sizes = [8, 16], strides = [1, 1]} : vector<16x16xf32> to vector<8x16xf32>
    %79 = vector.extract_strided_slice %7 {offsets = [8, 0], sizes = [8, 16], strides = [1, 1]} : vector<16x16xf32> to vector<8x16xf32>
    %80 = vector.extract_strided_slice %9 {offsets = [8, 0], sizes = [8, 64], strides = [1, 1]} : vector<16x64xf32> to vector<8x64xf32>
    %cst_29 = arith.constant 0.000000e+00 : f32
    %81 = vector.broadcast %cst_29 : f32 to vector<8x16xf32>
    %82 = vector.extract_strided_slice %78 {offsets = [0, 0], sizes = [8, 4], strides = [1, 1]} : vector<8x16xf32> to vector<8x4xf32>
    %83 = vector.extract_strided_slice %79 {offsets = [0, 0], sizes = [8, 4], strides = [1, 1]} : vector<8x16xf32> to vector<8x4xf32>
    %cst_30 = arith.constant dense<0.000000e+00> : vector<8x8xf32>
    %84 = tpu.matmul %82, %83, %cst_30 {dimension_numbers = #tpu.dot_dimension_numbers<[1], [1], [0], [0], [0, 0, 1, 0], [], []>} : vector<8x4xf32>, vector<8x4xf32>, vector<8x8xf32> -> vector<8x8xf32>
    %cst_31 = arith.constant dense<0xFF800000> : vector<8xf32>
    %85 = vector.multi_reduction <maximumf>, %84, %cst_31 [1] : vector<8x8xf32> to vector<8xf32>
    %86 = vector.shape_cast %85 : vector<8xf32> to vector<8x1xf32>
    %87 = vector.broadcast %86 : vector<8x1xf32> to vector<8x8xf32>
    %88 = arith.subf %84, %87 : vector<8x8xf32>
    %89 = math.exp %88 : vector<8x8xf32>
    %cst_32 = arith.constant dense<0.000000e+00> : vector<8xf32>
    %90 = vector.multi_reduction <add>, %89, %cst_32 [1] : vector<8x8xf32> to vector<8xf32>
    %91 = vector.shape_cast %90 : vector<8xf32> to vector<8x1xf32>
    %92 = vector.broadcast %91 : vector<8x1xf32> to vector<8x8xf32>
    %93 = arith.divf %89, %92 : vector<8x8xf32>
    %94 = vector.extract_strided_slice %80 {offsets = [0, 0], sizes = [8, 16], strides = [1, 1]} : vector<8x64xf32> to vector<8x16xf32>
    %cst_33 = arith.constant dense<0.000000e+00> : vector<8x16xf32>
    %95 = tpu.matmul %93, %94, %cst_33 {dimension_numbers = #tpu.dot_dimension_numbers<[1], [0], [0], [1], [0, 0, 1, 1], [], []>} : vector<8x8xf32>, vector<8x16xf32>, vector<8x16xf32> -> vector<8x16xf32>
    %96 = arith.addf %81, %95 : vector<8x16xf32>
    %97 = vector.extract_strided_slice %78 {offsets = [0, 4], sizes = [8, 4], strides = [1, 1]} : vector<8x16xf32> to vector<8x4xf32>
    %98 = vector.extract_strided_slice %79 {offsets = [0, 4], sizes = [8, 4], strides = [1, 1]} : vector<8x16xf32> to vector<8x4xf32>
    %cst_34 = arith.constant dense<0.000000e+00> : vector<8x8xf32>
    %99 = tpu.matmul %97, %98, %cst_34 {dimension_numbers = #tpu.dot_dimension_numbers<[1], [1], [0], [0], [0, 0, 1, 0], [], []>} : vector<8x4xf32>, vector<8x4xf32>, vector<8x8xf32> -> vector<8x8xf32>
    %cst_35 = arith.constant dense<0xFF800000> : vector<8xf32>
    %100 = vector.multi_reduction <maximumf>, %99, %cst_35 [1] : vector<8x8xf32> to vector<8xf32>
    %101 = vector.shape_cast %100 : vector<8xf32> to vector<8x1xf32>
    %102 = vector.broadcast %101 : vector<8x1xf32> to vector<8x8xf32>
    %103 = arith.subf %99, %102 : vector<8x8xf32>
    %104 = math.exp %103 : vector<8x8xf32>
    %cst_36 = arith.constant dense<0.000000e+00> : vector<8xf32>
    %105 = vector.multi_reduction <add>, %104, %cst_36 [1] : vector<8x8xf32> to vector<8xf32>
    %106 = vector.shape_cast %105 : vector<8xf32> to vector<8x1xf32>
    %107 = vector.broadcast %106 : vector<8x1xf32> to vector<8x8xf32>
    %108 = arith.divf %104, %107 : vector<8x8xf32>
    %109 = vector.extract_strided_slice %80 {offsets = [0, 16], sizes = [8, 16], strides = [1, 1]} : vector<8x64xf32> to vector<8x16xf32>
    %cst_37 = arith.constant dense<0.000000e+00> : vector<8x16xf32>
    %110 = tpu.matmul %108, %109, %cst_37 {dimension_numbers = #tpu.dot_dimension_numbers<[1], [0], [0], [1], [0, 0, 1, 1], [], []>} : vector<8x8xf32>, vector<8x16xf32>, vector<8x16xf32> -> vector<8x16xf32>
    %111 = arith.addf %96, %110 : vector<8x16xf32>
    %112 = vector.extract_strided_slice %78 {offsets = [0, 8], sizes = [8, 4], strides = [1, 1]} : vector<8x16xf32> to vector<8x4xf32>
    %113 = vector.extract_strided_slice %79 {offsets = [0, 8], sizes = [8, 4], strides = [1, 1]} : vector<8x16xf32> to vector<8x4xf32>
    %cst_38 = arith.constant dense<0.000000e+00> : vector<8x8xf32>
    %114 = tpu.matmul %112, %113, %cst_38 {dimension_numbers = #tpu.dot_dimension_numbers<[1], [1], [0], [0], [0, 0, 1, 0], [], []>} : vector<8x4xf32>, vector<8x4xf32>, vector<8x8xf32> -> vector<8x8xf32>
    %cst_39 = arith.constant dense<0xFF800000> : vector<8xf32>
    %115 = vector.multi_reduction <maximumf>, %114, %cst_39 [1] : vector<8x8xf32> to vector<8xf32>
    %116 = vector.shape_cast %115 : vector<8xf32> to vector<8x1xf32>
    %117 = vector.broadcast %116 : vector<8x1xf32> to vector<8x8xf32>
    %118 = arith.subf %114, %117 : vector<8x8xf32>
    %119 = math.exp %118 : vector<8x8xf32>
    %cst_40 = arith.constant dense<0.000000e+00> : vector<8xf32>
    %120 = vector.multi_reduction <add>, %119, %cst_40 [1] : vector<8x8xf32> to vector<8xf32>
    %121 = vector.shape_cast %120 : vector<8xf32> to vector<8x1xf32>
    %122 = vector.broadcast %121 : vector<8x1xf32> to vector<8x8xf32>
    %123 = arith.divf %119, %122 : vector<8x8xf32>
    %124 = vector.extract_strided_slice %80 {offsets = [0, 32], sizes = [8, 16], strides = [1, 1]} : vector<8x64xf32> to vector<8x16xf32>
    %cst_41 = arith.constant dense<0.000000e+00> : vector<8x16xf32>
    %125 = tpu.matmul %123, %124, %cst_41 {dimension_numbers = #tpu.dot_dimension_numbers<[1], [0], [0], [1], [0, 0, 1, 1], [], []>} : vector<8x8xf32>, vector<8x16xf32>, vector<8x16xf32> -> vector<8x16xf32>
    %126 = arith.addf %111, %125 : vector<8x16xf32>
    %127 = vector.extract_strided_slice %78 {offsets = [0, 12], sizes = [8, 4], strides = [1, 1]} : vector<8x16xf32> to vector<8x4xf32>
    %128 = vector.extract_strided_slice %79 {offsets = [0, 12], sizes = [8, 4], strides = [1, 1]} : vector<8x16xf32> to vector<8x4xf32>
    %cst_42 = arith.constant dense<0.000000e+00> : vector<8x8xf32>
    %129 = tpu.matmul %127, %128, %cst_42 {dimension_numbers = #tpu.dot_dimension_numbers<[1], [1], [0], [0], [0, 0, 1, 0], [], []>} : vector<8x4xf32>, vector<8x4xf32>, vector<8x8xf32> -> vector<8x8xf32>
    %cst_43 = arith.constant dense<0xFF800000> : vector<8xf32>
    %130 = vector.multi_reduction <maximumf>, %129, %cst_43 [1] : vector<8x8xf32> to vector<8xf32>
    %131 = vector.shape_cast %130 : vector<8xf32> to vector<8x1xf32>
    %132 = vector.broadcast %131 : vector<8x1xf32> to vector<8x8xf32>
    %133 = arith.subf %129, %132 : vector<8x8xf32>
    %134 = math.exp %133 : vector<8x8xf32>
    %cst_44 = arith.constant dense<0.000000e+00> : vector<8xf32>
    %135 = vector.multi_reduction <add>, %134, %cst_44 [1] : vector<8x8xf32> to vector<8xf32>
    %136 = vector.shape_cast %135 : vector<8xf32> to vector<8x1xf32>
    %137 = vector.broadcast %136 : vector<8x1xf32> to vector<8x8xf32>
    %138 = arith.divf %134, %137 : vector<8x8xf32>
    %139 = vector.extract_strided_slice %80 {offsets = [0, 48], sizes = [8, 16], strides = [1, 1]} : vector<8x64xf32> to vector<8x16xf32>
    %cst_45 = arith.constant dense<0.000000e+00> : vector<8x16xf32>
    %140 = tpu.matmul %138, %139, %cst_45 {dimension_numbers = #tpu.dot_dimension_numbers<[1], [0], [0], [1], [0, 0, 1, 1], [], []>} : vector<8x8xf32>, vector<8x16xf32>, vector<8x16xf32> -> vector<8x16xf32>
    %141 = arith.addf %126, %140 : vector<8x16xf32>
    %c0_46 = arith.constant 0 : index
    %c0_47 = arith.constant 0 : index
    %142 = vector.load %arg5[%c0_46, %c0_47] : memref<1x16xf32, #tpu.memory_space<vmem>>, vector<1x16xf32>
    %143 = vector.broadcast %142 : vector<1x16xf32> to vector<8x16xf32>
    %144 = arith.addf %141, %143 : vector<8x16xf32>
    %c8 = arith.constant 8 : index
    %c0_48 = arith.constant 0 : index
    %145 = vector.load %arg6[%c8, %c0_48] : memref<16x16xf32, #tpu.memory_space<vmem>>, vector<8x16xf32>
    tpu.vector_store %arg6[%c8, %c0_48], %144 {strides = array<i32>} : memref<16x16xf32, #tpu.memory_space<vmem>>, vector<8x16xf32>,
    return
  }
  func.func @transform_0(%arg0: i32) -> (i32, i32) {
    %c0_i32 = arith.constant 0 : i32
    %c0_i32_0 = arith.constant 0 : i32
    %c0_i32_1 = arith.constant 0 : i32
    return %c0_i32, %c0_i32_0 : i32, i32
  }
  func.func @transform_1(%arg0: i32) -> (i32, i32) {
    %c0_i32 = arith.constant 0 : i32
    %c0_i32_0 = arith.constant 0 : i32
    %c0_i32_1 = arith.constant 0 : i32
    return %c0_i32, %c0_i32_0 : i32, i32
  }
  func.func @transform_2(%arg0: i32) -> (i32, i32) {
    %c0_i32 = arith.constant 0 : i32
    %c0_i32_0 = arith.constant 0 : i32
    %c0_i32_1 = arith.constant 0 : i32
    return %c0_i32, %c0_i32_0 : i32, i32
  }
  func.func @transform_3(%arg0: i32) -> (i32, i32) {
    %c0_i32 = arith.constant 0 : i32
    %c0_i32_0 = arith.constant 0 : i32
    %c0_i32_1 = arith.constant 0 : i32
    return %c0_i32, %c0_i32_0 : i32, i32
  }
  func.func @transform_4(%arg0: i32) -> (i32, i32) {
    %c0_i32 = arith.constant 0 : i32
    %c0_i32_0 = arith.constant 0 : i32
    %c0_i32_1 = arith.constant 0 : i32
    return %c0_i32, %c0_i32_0 : i32, i32
  }
  func.func @transform_5(%arg0: i32) -> (i32, i32) {
    %c0_i32 = arith.constant 0 : i32
    %c0_i32_0 = arith.constant 0 : i32
    %c0_i32_1 = arith.constant 0 : i32
    return %c0_i32, %c0_i32_0 : i32, i32
  }
}

</mosaic_0001>

<llo_original>
// kernel: tpu_custom_call.1
$region0: #{tpu_custom_call.1}
  #allocation0 [shape = 'u32[]', space=smem, size = 0x4, offset = 0x4, fixed_abs, tag = 'smem constant byte address 0x4 - core index']
  #allocation1 [shape = 'u32[72,128]{1,0:T(1,128)}', space=vmem, size = 0x9000, scoped, tag = 'internal scratch']
  %s0 = inlined_call_operand.hbm [shape: f32[16,16], index: 0, kind: input, shape index: {}]
  %s1 = inlined_call_operand.hbm [shape: f32[16,32], index: 1, kind: input, shape index: {}]
  %s2 = inlined_call_operand.vmem [shape: f32[1,32], index: 2, kind: input, shape index: {}]
  %s3 = inlined_call_operand.hbm [shape: f32[16,64], index: 3, kind: input, shape index: {}]
  %s4 = inlined_call_operand.vmem [shape: f32[1,16], index: 4, kind: input, shape index: {}]
  %s5 = inlined_call_operand.hbm [shape: f32[16,16], index: 5, kind: output, shape index: {}]
  %s6 = sld [smem:[#allocation0]]
  $region42: #{tpu_custom_call.1} parent=0
    _
  %s8 = ssub.s32 1, %s6
  %s9 = scalar_select 0, %s8, %s6
  $region1: #{tpu_custom_call.1} parent=0
    #allocation2 [shape = 'u8[8192]{0}', space=vmem, size = 0x2000, scoped, tag = 'input window, operand 0, single buffered']
    #allocation3 [shape = 's32[1]{0}', space=sflag, size = 0x4, scoped, tag = 'scoped memory for tpu_custom_call.1']
    #allocation4 [shape = 's32[1]{0}', space=sflag, size = 0x4, scoped, tag = 'scoped memory for tpu_custom_call.1']
    #allocation5 [shape = 'u8[8192]{0}', space=vmem, size = 0x2000, scoped, tag = 'input window, operand 1, single buffered']
    #allocation6 [shape = 's32[1]{0}', space=sflag, size = 0x4, scoped, tag = 'scoped memory for tpu_custom_call.1']
    #allocation7 [shape = 'u8[8192]{0}', space=vmem, size = 0x2000, scoped, tag = 'input window, operand 3, single buffered']
    #allocation8 [shape = 'u8[8192]{0}', space=vmem, size = 0x2000, scoped, tag = 'output window, operand 0, single buffered']
    %10 = vsyncpa [#allocation3], 0
    %11 = vsyncpa [#allocation6], 0
    %12 = vsyncpa [#allocation4], 0
    // Predicated region
    $region2: #{tpu_custom_call.1} parent=1 // pred_check
      _
    $region3: #{tpu_custom_call.1} parent=1 // pred_check_branch
      %14 = sbr.rel (0) target = $region5
    $region4: #{tpu_custom_call.1} parent=1 // pred_region
      %16 = vsyncadd [#allocation3], 0
      %s17 = sshll.u32 %s0, 4
      %s18 = int_to_ptr.hbm [resolvable:$true] %s17
      %s19 = sshll.u32 [#allocation2], 4
      %s20 = int_to_ptr.vmem [resolvable:$true] %s19
      %25 = dma.hbm_to_vmem [thread:$0]  %s18, 256, %s20, [#allocation3], 128, 128, 8
    $region5: #{tpu_custom_call.1} parent=1 // pred_fallthru
      _
    // Predicated region
    $region6: #{tpu_custom_call.1} parent=1 // pred_check
      _
    $region7: #{tpu_custom_call.1} parent=1 // pred_check_branch
      %27 = sbr.rel (0) target = $region9
    $region8: #{tpu_custom_call.1} parent=1 // pred_region
      %29 = vsyncadd [#allocation6], 0
      %s30 = sshll.u32 %s1, 4
      %s31 = int_to_ptr.hbm [resolvable:$true] %s30
      %s32 = sshll.u32 [#allocation5], 4
      %s33 = int_to_ptr.vmem [resolvable:$true] %s32
      %38 = dma.hbm_to_vmem [thread:$0]  %s31, 256, %s33, [#allocation6], 128, 128, 8
    $region9: #{tpu_custom_call.1} parent=1 // pred_fallthru
      _
    // Predicated region
    $region10: #{tpu_custom_call.1} parent=1 // pred_check
      _
    $region11: #{tpu_custom_call.1} parent=1 // pred_check_branch
      %40 = sbr.rel (0) target = $region13
    $region12: #{tpu_custom_call.1} parent=1 // pred_region
      _
    $region13: #{tpu_custom_call.1} parent=1 // pred_fallthru
      _
    // Predicated region
    $region14: #{tpu_custom_call.1} parent=1 // pred_check
      _
    $region15: #{tpu_custom_call.1} parent=1 // pred_check_branch
      %42 = sbr.rel (0) target = $region17
    $region16: #{tpu_custom_call.1} parent=1 // pred_region
      %44 = vsyncadd [#allocation6], 0
      %s45 = sshll.u32 %s3, 4
      %s46 = int_to_ptr.hbm [resolvable:$true] %s45
      %s47 = sshll.u32 [#allocation7], 4
      %s48 = int_to_ptr.vmem [resolvable:$true] %s47
      %53 = dma.hbm_to_vmem [thread:$0]  %s46, 256, %s48, [#allocation6], 128, 128, 8
    $region17: #{tpu_custom_call.1} parent=1 // pred_fallthru
      _
    // Predicated region
    $region18: #{tpu_custom_call.1} parent=1 // pred_check
      _
    $region19: #{tpu_custom_call.1} parent=1 // pred_check_branch
      %55 = sbr.rel (0) target = $region21
    $region20: #{tpu_custom_call.1} parent=1 // pred_region
      _
    $region21: #{tpu_custom_call.1} parent=1 // pred_fallthru
      _
    // Predicated region
    $region22: #{tpu_custom_call.1} parent=1 // pred_check
      _
    $region23: #{tpu_custom_call.1} parent=1 // pred_check_branch
      %57 = sbr.rel (0) target = $region25
    $region24: #{tpu_custom_call.1} parent=1 // pred_region
      %59 = dma.done [#allocation3], 256
    $region25: #{tpu_custom_call.1} parent=1 // pred_fallthru
      _
    // Predicated region
    $region26: #{tpu_custom_call.1} parent=1 // pred_check
      _
    $region27: #{tpu_custom_call.1} parent=1 // pred_check_branch
      %61 = sbr.rel (0) target = $region29
    $region28: #{tpu_custom_call.1} parent=1 // pred_region
      %63 = dma.done [#allocation6], 256
    $region29: #{tpu_custom_call.1} parent=1 // pred_fallthru
      _
    // Predicated region
    $region30: #{tpu_custom_call.1} parent=1 // pred_check
      _
    $region31: #{tpu_custom_call.1} parent=1 // pred_check_branch
      %65 = sbr.rel (0) target = $region33
    $region32: #{tpu_custom_call.1} parent=1 // pred_region
      %67 = dma.done [#allocation6], 256
    $region33: #{tpu_custom_call.1} parent=1 // pred_fallthru
      _
    %v68 = vld [vmem:[#allocation2] sm:$0xff]
    %v69 = vld [vmem:[#allocation2 + $0x8] sm:$0xff]
    %v70 = vld [vmem:[#allocation5] sm:$0xff]
    %v71 = vld [vmem:[#allocation5 + $0x8] sm:$0xff]
    %v72 = vld [vmem:[%s2] sm:$0x1]
    %v74 = vperm.slane %v72, 0
    %vm76 = vcmask 130048
    %v78 = vsel %vm76, %v68, 0
    %v81 = vsel %vm76, %v69, 0
    %83 = vmatpush.msra.mxu0 0.0
    %84 = vmatpush.msra.mxu0 0.0
    %85 = vmatpush.msra.mxu0 0.0
    %86 = vmatpush.msra.mxu0 0.0
    %87 = vmatpush.msra.mxu0 0.0
    %88 = vmatpush.msra.mxu0 0.0
    %89 = vmatpush.msra.mxu0 0.0
    %90 = vmatpush.msra.mxu0 0.0
    %91 = vmatpush.msra.mxu0 0.0
    %92 = vmatpush.msra.mxu0 0.0
    %93 = vmatpush.msra.mxu0 0.0
    %94 = vmatpush.msra.mxu0 0.0
    %95 = vmatpush.msra.mxu0 0.0
    %96 = vmatpush.msra.mxu0 0.0
    %97 = vmatpush.msra.mxu0 %v71
    %98 = vmatpush.msra.mxu0 %v70
    %99 = vmatmul.f32.gmra.mxu0 %v78
    %v100 = vpop.f32.mrf.mxu0
    %v101 = vadd.f32 %v74, %v100
    %102 = vmatmul.f32.gmra.mxu0 %v81
    %v103 = vpop.f32.mrf.mxu0
    %v104 = vadd.f32 %v74, %v103
    %105 = vdwg.mxu0
    %v106 = vld [vmem:[#allocation7] sm:$0xff]
    %v107 = vld [vmem:[#allocation7 + $0x8] sm:$0xff]
    %108 = vmatpush.msra.mxu0 0.0
    %109 = vmatpush.msra.mxu0 0.0
    %110 = vmatpush.msra.mxu0 0.0
    %111 = vmatpush.msra.mxu0 0.0
    %112 = vmatpush.msra.mxu0 0.0
    %113 = vmatpush.msra.mxu0 0.0
    %114 = vmatpush.msra.mxu0 0.0
    %115 = vmatpush.msra.mxu0 0.0
    %116 = vmatpush.msra.mxu0 0.0
    %117 = vmatpush.msra.mxu0 0.0
    %118 = vmatpush.msra.mxu0 0.0
    %119 = vmatpush.msra.mxu0 0.0
    %120 = vmatpush.msra.mxu0 0.0
    %121 = vmatpush.msra.mxu0 0.0
    %122 = vmatpush.msra.mxu0 %v107
    %123 = vmatpush.msra.mxu0 %v106
    %124 = vmatmul.f32.gmra.mxu0 %v78
    %v125 = vpop.f32.mrf.mxu0
    %v126 = vadd.f32 0.0, %v125
    %127 = vmatmul.f32.gmra.mxu0 %v81
    %v128 = vpop.f32.mrf.mxu0
    %v129 = vadd.f32 0.0, %v128
    %130 = vdwg.mxu0
    %132 = vrot.lane.b32.xlu0 %v101, 112
    %v133 = vpop.permute.xlu0 %132
    %vm134 = vcmask 31744
    %v135 = vsel %vm134, %v101, 0
    %v137 = vsel %vm134, %v133, 0
    %139 = vmatpush.xpose.msra.mxu0 0.0
    %140 = vmatpush.xpose.msra.mxu0 0.0
    %141 = vmatpush.xpose.msra.mxu0 0.0
    %142 = vmatpush.xpose.msra.mxu0 0.0
    %143 = vmatpush.xpose.msra.mxu0 0.0
    %144 = vmatpush.xpose.msra.mxu0 0.0
    %145 = vmatpush.xpose.msra.mxu0 0.0
    %146 = vmatpush.xpose.msra.mxu0 0.0
    %147 = vmatpush.xpose.msra.mxu0 0.0
    %148 = vmatpush.xpose.msra.mxu0 0.0
    %149 = vmatpush.xpose.msra.mxu0 0.0
    %150 = vmatpush.xpose.msra.mxu0 0.0
    %151 = vmatpush.xpose.msra.mxu0 0.0
    %152 = vmatpush.xpose.msra.mxu0 0.0
    %153 = vmatpush.xpose.msra.mxu0 0.0
    %154 = vmatpush.xpose.msra.mxu0 %v137
    %155 = vmatmul.f32.gmra.mxu0 %v135
    %v156 = vpop.f32.mrf.mxu0
    %v157 = vadd.f32 0.0, %v156
    %158 = vdwg.mxu0
    %vm159 = vcmask 64512
    %v160 = vsel %vm159, %v157, -inf
    %161 = vmax.xlane.f32.xlu0 %v160
    %v162 = vpop.xlane.xlu0 %161
    %v163 = vsub.f32 %v157, %v162
    %v164 = vmul.f32 %v163, 1.442695
    %v165 = vpow.pop %v164
    %v166 = vsel %vm159, %v165, 0.0
    %167 = vadd.xlane.f32.xlu0 %v166
    %v168 = vpop.xlane.xlu0 %167
    %v169 = vrcp.pop %v168
    %v170 = vmul.f32 %v168, %v169
    %v171 = vsub.f32 1.0, %v170
    %v172 = vmul.f32 %v169, %v171
    %v173 = vadd.f32 %v169, %v172
    %vm174 = vweird.f32 %v168
    %vm175 = vweird.f32 %v169
    %vm176 = vmor %vm174, %vm175
    %v177 = vsel %vm176, %v169, %v173
    %v178 = vand.u32 2147483647, %v168
    %vm179 = vcmp.eq.f32.partialorder %v178, 8.507059e+37
    %v180 = vand.u32 %v168, 2147483648
    %v181 = vor.u32 1.1754944e-38, %v180
    %v182 = vsel %vm179, %v181, %v177
    %v183 = vmul.f32 %v165, %v182
    %184 = vrot.lane.b32.xlu0 %v101, 124
    %v185 = vpop.permute.xlu0 %184
    %186 = vrot.lane.b32.xlu0 %v101, 108
    %v187 = vpop.permute.xlu0 %186
    %v188 = vsel %vm134, %v185, 0
    %v190 = vsel %vm134, %v187, 0
    %192 = vmatpush.xpose.msra.mxu0 0.0
    %193 = vmatpush.xpose.msra.mxu0 0.0
    %194 = vmatpush.xpose.msra.mxu0 0.0
    %195 = vmatpush.xpose.msra.mxu0 0.0
    %196 = vmatpush.xpose.msra.mxu0 0.0
    %197 = vmatpush.xpose.msra.mxu0 0.0
    %198 = vmatpush.xpose.msra.mxu0 0.0
    %199 = vmatpush.xpose.msra.mxu0 0.0
    %200 = vmatpush.xpose.msra.mxu0 0.0
    %201 = vmatpush.xpose.msra.mxu0 0.0
    %202 = vmatpush.xpose.msra.mxu0 0.0
    %203 = vmatpush.xpose.msra.mxu0 0.0
    %204 = vmatpush.xpose.msra.mxu0 0.0
    %205 = vmatpush.xpose.msra.mxu0 0.0
    %206 = vmatpush.xpose.msra.mxu0 0.0
    %207 = vmatpush.xpose.msra.mxu0 %v190
    %208 = vmatmul.f32.gmra.mxu0 %v188
    %v209 = vpop.f32.mrf.mxu0
    %v210 = vadd.f32 0.0, %v209
    %211 = vdwg.mxu0
    %v212 = vsel %vm159, %v210, -inf
    %213 = vmax.xlane.f32.xlu0 %v212
    %v214 = vpop.xlane.xlu0 %213
    %v215 = vsub.f32 %v210, %v214
    %v216 = vmul.f32 %v215, 1.442695
    %v217 = vpow.pop %v216
    %v218 = vsel %vm159, %v217, 0.0
    %219 = vadd.xlane.f32.xlu0 %v218
    %v220 = vpop.xlane.xlu0 %219
    %v221 = vrcp.pop %v220
    %v222 = vmul.f32 %v220, %v221
    %v223 = vsub.f32 1.0, %v222
    %v224 = vmul.f32 %v221, %v223
    %v225 = vadd.f32 %v221, %v224
    %vm226 = vweird.f32 %v220
    %vm227 = vweird.f32 %v221
    %vm228 = vmor %vm226, %vm227
    %v229 = vsel %vm228, %v221, %v225
    %v230 = vand.u32 2147483647, %v220
    %vm231 = vcmp.eq.f32.partialorder %v230, 8.507059e+37
    %v232 = vand.u32 %v220, 2147483648
    %v233 = vor.u32 1.1754944e-38, %v232
    %v234 = vsel %vm231, %v233, %v229
    %v235 = vmul.f32 %v217, %v234
    %237 = vrot.lane.b32.xlu0 %v126, 112
    %v238 = vpop.permute.xlu0 %237
    %v241 = vsel %vm159, %v235, 0
    %243 = vmatpush.msra.mxu0 0.0
    %244 = vmatpush.msra.mxu0 0.0
    %245 = vmatpush.msra.mxu0 0.0
    %246 = vmatpush.msra.mxu0 0.0
    %247 = vmatpush.msra.mxu0 0.0
    %248 = vmatpush.msra.mxu0 0.0
    %249 = vmatpush.msra.mxu0 0.0
    %250 = vmatpush.msra.mxu0 0.0
    %251 = vmatpush.msra.mxu0 0.0
    %252 = vmatpush.msra.mxu0 0.0
    %253 = vmatpush.msra.mxu0 0.0
    %254 = vmatpush.msra.mxu0 0.0
    %255 = vmatpush.msra.mxu0 0.0
    %256 = vmatpush.msra.mxu0 0.0
    %257 = vmatpush.msra.mxu0 0.0
    %258 = vmatpush.msra.mxu0 %v238
    %259 = vmatmul.f32.gmra.mxu0 %v241
    %v260 = vpop.f32.mrf.mxu0
    %v261 = vadd.f32 0.0, %v260
    %262 = vdwg.mxu0
    %v264 = vsel %vm159, %v183, 0
    %266 = vmatpush.msra.mxu0 0.0
    %267 = vmatpush.msra.mxu0 0.0
    %268 = vmatpush.msra.mxu0 0.0
    %269 = vmatpush.msra.mxu0 0.0
    %270 = vmatpush.msra.mxu0 0.0
    %271 = vmatpush.msra.mxu0 0.0
    %272 = vmatpush.msra.mxu0 0.0
    %273 = vmatpush.msra.mxu0 0.0
    %274 = vmatpush.msra.mxu0 0.0
    %275 = vmatpush.msra.mxu0 0.0
    %276 = vmatpush.msra.mxu0 0.0
    %277 = vmatpush.msra.mxu0 0.0
    %278 = vmatpush.msra.mxu0 0.0
    %279 = vmatpush.msra.mxu0 0.0
    %280 = vmatpush.msra.mxu0 0.0
    %281 = vmatpush.msra.mxu0 %v126
    %282 = vmatmul.f32.gmra.mxu0 %v264
    %v283 = vpop.f32.mrf.mxu0
    %v284 = vadd.f32 %v261, %v283
    %285 = vdwg.mxu0
    %286 = vrot.lane.b32.xlu0 %v101, 120
    %v287 = vpop.permute.xlu0 %286
    %288 = vrot.lane.b32.xlu0 %v101, 104
    %v289 = vpop.permute.xlu0 %288
    %v290 = vsel %vm134, %v287, 0
    %v292 = vsel %vm134, %v289, 0
    %294 = vmatpush.xpose.msra.mxu0 0.0
    %295 = vmatpush.xpose.msra.mxu0 0.0
    %296 = vmatpush.xpose.msra.mxu0 0.0
    %297 = vmatpush.xpose.msra.mxu0 0.0
    %298 = vmatpush.xpose.msra.mxu0 0.0
    %299 = vmatpush.xpose.msra.mxu0 0.0
    %300 = vmatpush.xpose.msra.mxu0 0.0
    %301 = vmatpush.xpose.msra.mxu0 0.0
    %302 = vmatpush.xpose.msra.mxu0 0.0
    %303 = vmatpush.xpose.msra.mxu0 0.0
    %304 = vmatpush.xpose.msra.mxu0 0.0
    %305 = vmatpush.xpose.msra.mxu0 0.0
    %306 = vmatpush.xpose.msra.mxu0 0.0
    %307 = vmatpush.xpose.msra.mxu0 0.0
    %308 = vmatpush.xpose.msra.mxu0 0.0
    %309 = vmatpush.xpose.msra.mxu0 %v292
    %310 = vmatmul.f32.gmra.mxu0 %v290
    %v311 = vpop.f32.mrf.mxu0
    %v312 = vadd.f32 0.0, %v311
    %313 = vdwg.mxu0
    %v314 = vsel %vm159, %v312, -inf
    %315 = vmax.xlane.f32.xlu0 %v314
    %v316 = vpop.xlane.xlu0 %315
    %v317 = vsub.f32 %v312, %v316
    %v318 = vmul.f32 %v317, 1.442695
    %v319 = vpow.pop %v318
    %v320 = vsel %vm159, %v319, 0.0
    %321 = vadd.xlane.f32.xlu0 %v320
    %v322 = vpop.xlane.xlu0 %321
    %v323 = vrcp.pop %v322
    %v324 = vmul.f32 %v322, %v323
    %v325 = vsub.f32 1.0, %v324
    %v326 = vmul.f32 %v323, %v325
    %v327 = vadd.f32 %v323, %v326
    %vm328 = vweird.f32 %v322
    %vm329 = vweird.f32 %v323
    %vm330 = vmor %vm328, %vm329
    %v331 = vsel %vm330, %v323, %v327
    %v332 = vand.u32 2147483647, %v322
    %vm333 = vcmp.eq.f32.partialorder %v332, 8.507059e+37
    %v334 = vand.u32 %v322, 2147483648
    %v335 = vor.u32 1.1754944e-38, %v334
    %v336 = vsel %vm333, %v335, %v331
    %v337 = vmul.f32 %v319, %v336
    %338 = vrot.lane.b32.xlu0 %v126, 96
    %v339 = vpop.permute.xlu0 %338
    %v342 = vsel %vm159, %v337, 0
    %344 = vmatpush.msra.mxu0 0.0
    %345 = vmatpush.msra.mxu0 0.0
    %346 = vmatpush.msra.mxu0 0.0
    %347 = vmatpush.msra.mxu0 0.0
    %348 = vmatpush.msra.mxu0 0.0
    %349 = vmatpush.msra.mxu0 0.0
    %350 = vmatpush.msra.mxu0 0.0
    %351 = vmatpush.msra.mxu0 0.0
    %352 = vmatpush.msra.mxu0 0.0
    %353 = vmatpush.msra.mxu0 0.0
    %354 = vmatpush.msra.mxu0 0.0
    %355 = vmatpush.msra.mxu0 0.0
    %356 = vmatpush.msra.mxu0 0.0
    %357 = vmatpush.msra.mxu0 0.0
    %358 = vmatpush.msra.mxu0 0.0
    %359 = vmatpush.msra.mxu0 %v339
    %360 = vmatmul.f32.gmra.mxu0 %v342
    %v361 = vpop.f32.mrf.mxu0
    %v362 = vadd.f32 0.0, %v361
    %363 = vdwg.mxu0
    %v364 = vadd.f32 %v284, %v362
    %365 = vrot.lane.b32.xlu0 %v101, 116
    %v366 = vpop.permute.xlu0 %365
    %367 = vrot.lane.b32.xlu0 %v101, 100
    %v368 = vpop.permute.xlu0 %367
    %v369 = vsel %vm134, %v366, 0
    %v371 = vsel %vm134, %v368, 0
    %373 = vmatpush.xpose.msra.mxu0 0.0
    %374 = vmatpush.xpose.msra.mxu0 0.0
    %375 = vmatpush.xpose.msra.mxu0 0.0
    %376 = vmatpush.xpose.msra.mxu0 0.0
    %377 = vmatpush.xpose.msra.mxu0 0.0
    %378 = vmatpush.xpose.msra.mxu0 0.0
    %379 = vmatpush.xpose.msra.mxu0 0.0
    %380 = vmatpush.xpose.msra.mxu0 0.0
    %381 = vmatpush.xpose.msra.mxu0 0.0
    %382 = vmatpush.xpose.msra.mxu0 0.0
    %383 = vmatpush.xpose.msra.mxu0 0.0
    %384 = vmatpush.xpose.msra.mxu0 0.0
    %385 = vmatpush.xpose.msra.mxu0 0.0
    %386 = vmatpush.xpose.msra.mxu0 0.0
    %387 = vmatpush.xpose.msra.mxu0 0.0
    %388 = vmatpush.xpose.msra.mxu0 %v371
    %389 = vmatmul.f32.gmra.mxu0 %v369
    %v390 = vpop.f32.mrf.mxu0
    %v391 = vadd.f32 0.0, %v390
    %392 = vdwg.mxu0
    %v393 = vsel %vm159, %v391, -inf
    %394 = vmax.xlane.f32.xlu0 %v393
    %v395 = vpop.xlane.xlu0 %394
    %v396 = vsub.f32 %v391, %v395
    %v397 = vmul.f32 %v396, 1.442695
    %v398 = vpow.pop %v397
    %v399 = vsel %vm159, %v398, 0.0
    %400 = vadd.xlane.f32.xlu0 %v399
    %v401 = vpop.xlane.xlu0 %400
    %v402 = vrcp.pop %v401
    %v403 = vmul.f32 %v401, %v402
    %v404 = vsub.f32 1.0, %v403
    %v405 = vmul.f32 %v402, %v404
    %v406 = vadd.f32 %v402, %v405
    %vm407 = vweird.f32 %v401
    %vm408 = vweird.f32 %v402
    %vm409 = vmor %vm407, %vm408
    %v410 = vsel %vm409, %v402, %v406
    %v411 = vand.u32 2147483647, %v401
    %vm412 = vcmp.eq.f32.partialorder %v411, 8.507059e+37
    %v413 = vand.u32 %v401, 2147483648
    %v414 = vor.u32 1.1754944e-38, %v413
    %v415 = vsel %vm412, %v414, %v410
    %v416 = vmul.f32 %v398, %v415
    %417 = vrot.lane.b32.xlu0 %v126, 80
    %v418 = vpop.permute.xlu0 %417
    %v421 = vsel %vm159, %v416, 0
    %423 = vmatpush.msra.mxu0 0.0
    %424 = vmatpush.msra.mxu0 0.0
    %425 = vmatpush.msra.mxu0 0.0
    %426 = vmatpush.msra.mxu0 0.0
    %427 = vmatpush.msra.mxu0 0.0
    %428 = vmatpush.msra.mxu0 0.0
    %429 = vmatpush.msra.mxu0 0.0
    %430 = vmatpush.msra.mxu0 0.0
    %431 = vmatpush.msra.mxu0 0.0
    %432 = vmatpush.msra.mxu0 0.0
    %433 = vmatpush.msra.mxu0 0.0
    %434 = vmatpush.msra.mxu0 0.0
    %435 = vmatpush.msra.mxu0 0.0
    %436 = vmatpush.msra.mxu0 0.0
    %437 = vmatpush.msra.mxu0 0.0
    %438 = vmatpush.msra.mxu0 %v418
    %439 = vmatmul.f32.gmra.mxu0 %v421
    %v440 = vpop.f32.mrf.mxu0
    %v441 = vadd.f32 0.0, %v440
    %442 = vdwg.mxu0
    %v443 = vadd.f32 %v364, %v441
    %v444 = vld [vmem:[%s4] sm:$0x1]
    %v446 = vperm.slane %v444, 0
    %v448 = vadd.f32 %v443, %v446
    %449 = vst.msk [vmem:[#allocation8] sm:$0xff] %vm76, %v448
    %451 = vrot.lane.b32.xlu0 %v104, 112
    %v452 = vpop.permute.xlu0 %451
    %v453 = vsel %vm134, %v104, 0
    %v455 = vsel %vm134, %v452, 0
    %457 = vmatpush.xpose.msra.mxu0 0.0
    %458 = vmatpush.xpose.msra.mxu0 0.0
    %459 = vmatpush.xpose.msra.mxu0 0.0
    %460 = vmatpush.xpose.msra.mxu0 0.0
    %461 = vmatpush.xpose.msra.mxu0 0.0
    %462 = vmatpush.xpose.msra.mxu0 0.0
    %463 = vmatpush.xpose.msra.mxu0 0.0
    %464 = vmatpush.xpose.msra.mxu0 0.0
    %465 = vmatpush.xpose.msra.mxu0 0.0
    %466 = vmatpush.xpose.msra.mxu0 0.0
    %467 = vmatpush.xpose.msra.mxu0 0.0
    %468 = vmatpush.xpose.msra.mxu0 0.0
    %469 = vmatpush.xpose.msra.mxu0 0.0
    %470 = vmatpush.xpose.msra.mxu0 0.0
    %471 = vmatpush.xpose.msra.mxu0 0.0
    %472 = vmatpush.xpose.msra.mxu0 %v455
    %473 = vmatmul.f32.gmra.mxu0 %v453
    %v474 = vpop.f32.mrf.mxu0
    %v475 = vadd.f32 0.0, %v474
    %476 = vdwg.mxu0
    %v477 = vsel %vm159, %v475, -inf
    %478 = vmax.xlane.f32.xlu0 %v477
    %v479 = vpop.xlane.xlu0 %478
    %v480 = vsub.f32 %v475, %v479
    %v481 = vmul.f32 %v480, 1.442695
    %v482 = vpow.pop %v481
    %v483 = vsel %vm159, %v482, 0.0
    %484 = vadd.xlane.f32.xlu0 %v483
    %v485 = vpop.xlane.xlu0 %484
    %v486 = vrcp.pop %v485
    %v487 = vmul.f32 %v485, %v486
    %v488 = vsub.f32 1.0, %v487
    %v489 = vmul.f32 %v486, %v488
    %v490 = vadd.f32 %v486, %v489
    %vm491 = vweird.f32 %v485
    %vm492 = vweird.f32 %v486
    %vm493 = vmor %vm491, %vm492
    %v494 = vsel %vm493, %v486, %v490
    %v495 = vand.u32 2147483647, %v485
    %vm496 = vcmp.eq.f32.partialorder %v495, 8.507059e+37
    %v497 = vand.u32 %v485, 2147483648
    %v498 = vor.u32 1.1754944e-38, %v497
    %v499 = vsel %vm496, %v498, %v494
    %v500 = vmul.f32 %v482, %v499
    %501 = vrot.lane.b32.xlu0 %v104, 124
    %v502 = vpop.permute.xlu0 %501
    %503 = vrot.lane.b32.xlu0 %v104, 108
    %v504 = vpop.permute.xlu0 %503
    %v505 = vsel %vm134, %v502, 0
    %v507 = vsel %vm134, %v504, 0
    %509 = vmatpush.xpose.msra.mxu0 0.0
    %510 = vmatpush.xpose.msra.mxu0 0.0
    %511 = vmatpush.xpose.msra.mxu0 0.0
    %512 = vmatpush.xpose.msra.mxu0 0.0
    %513 = vmatpush.xpose.msra.mxu0 0.0
    %514 = vmatpush.xpose.msra.mxu0 0.0
    %515 = vmatpush.xpose.msra.mxu0 0.0
    %516 = vmatpush.xpose.msra.mxu0 0.0
    %517 = vmatpush.xpose.msra.mxu0 0.0
    %518 = vmatpush.xpose.msra.mxu0 0.0
    %519 = vmatpush.xpose.msra.mxu0 0.0
    %520 = vmatpush.xpose.msra.mxu0 0.0
    %521 = vmatpush.xpose.msra.mxu0 0.0
    %522 = vmatpush.xpose.msra.mxu0 0.0
    %523 = vmatpush.xpose.msra.mxu0 0.0
    %524 = vmatpush.xpose.msra.mxu0 %v507
    %525 = vmatmul.f32.gmra.mxu0 %v505
    %v526 = vpop.f32.mrf.mxu0
    %v527 = vadd.f32 0.0, %v526
    %528 = vdwg.mxu0
    %v529 = vsel %vm159, %v527, -inf
    %530 = vmax.xlane.f32.xlu0 %v529
    %v531 = vpop.xlane.xlu0 %530
    %v532 = vsub.f32 %v527, %v531
    %v533 = vmul.f32 %v532, 1.442695
    %v534 = vpow.pop %v533
    %v535 = vsel %vm159, %v534, 0.0
    %536 = vadd.xlane.f32.xlu0 %v535
    %v537 = vpop.xlane.xlu0 %536
    %v538 = vrcp.pop %v537
    %v539 = vmul.f32 %v537, %v538
    %v540 = vsub.f32 1.0, %v539
    %v541 = vmul.f32 %v538, %v540
    %v542 = vadd.f32 %v538, %v541
    %vm543 = vweird.f32 %v537
    %vm544 = vweird.f32 %v538
    %vm545 = vmor %vm543, %vm544
    %v546 = vsel %vm545, %v538, %v542
    %v547 = vand.u32 2147483647, %v537
    %vm548 = vcmp.eq.f32.partialorder %v547, 8.507059e+37
    %v549 = vand.u32 %v537, 2147483648
    %v550 = vor.u32 1.1754944e-38, %v549
    %v551 = vsel %vm548, %v550, %v546
    %v552 = vmul.f32 %v534, %v551
    %554 = vrot.lane.b32.xlu0 %v129, 112
    %v555 = vpop.permute.xlu0 %554
    %v558 = vsel %vm159, %v552, 0
    %560 = vmatpush.msra.mxu0 0.0
    %561 = vmatpush.msra.mxu0 0.0
    %562 = vmatpush.msra.mxu0 0.0
    %563 = vmatpush.msra.mxu0 0.0
    %564 = vmatpush.msra.mxu0 0.0
    %565 = vmatpush.msra.mxu0 0.0
    %566 = vmatpush.msra.mxu0 0.0
    %567 = vmatpush.msra.mxu0 0.0
    %568 = vmatpush.msra.mxu0 0.0
    %569 = vmatpush.msra.mxu0 0.0
    %570 = vmatpush.msra.mxu0 0.0
    %571 = vmatpush.msra.mxu0 0.0
    %572 = vmatpush.msra.mxu0 0.0
    %573 = vmatpush.msra.mxu0 0.0
    %574 = vmatpush.msra.mxu0 0.0
    %575 = vmatpush.msra.mxu0 %v555
    %576 = vmatmul.f32.gmra.mxu0 %v558
    %v577 = vpop.f32.mrf.mxu0
    %v578 = vadd.f32 0.0, %v577
    %579 = vdwg.mxu0
    %v581 = vsel %vm159, %v500, 0
    %583 = vmatpush.msra.mxu0 0.0
    %584 = vmatpush.msra.mxu0 0.0
    %585 = vmatpush.msra.mxu0 0.0
    %586 = vmatpush.msra.mxu0 0.0
    %587 = vmatpush.msra.mxu0 0.0
    %588 = vmatpush.msra.mxu0 0.0
    %589 = vmatpush.msra.mxu0 0.0
    %590 = vmatpush.msra.mxu0 0.0
    %591 = vmatpush.msra.mxu0 0.0
    %592 = vmatpush.msra.mxu0 0.0
    %593 = vmatpush.msra.mxu0 0.0
    %594 = vmatpush.msra.mxu0 0.0
    %595 = vmatpush.msra.mxu0 0.0
    %596 = vmatpush.msra.mxu0 0.0
    %597 = vmatpush.msra.mxu0 0.0
    %598 = vmatpush.msra.mxu0 %v129
    %599 = vmatmul.f32.gmra.mxu0 %v581
    %v600 = vpop.f32.mrf.mxu0
    %v601 = vadd.f32 %v578, %v600
    %602 = vdwg.mxu0
    %603 = vrot.lane.b32.xlu0 %v104, 120
    %v604 = vpop.permute.xlu0 %603
    %605 = vrot.lane.b32.xlu0 %v104, 104
    %v606 = vpop.permute.xlu0 %605
    %v607 = vsel %vm134, %v604, 0
    %v609 = vsel %vm134, %v606, 0
    %611 = vmatpush.xpose.msra.mxu0 0.0
    %612 = vmatpush.xpose.msra.mxu0 0.0
    %613 = vmatpush.xpose.msra.mxu0 0.0
    %614 = vmatpush.xpose.msra.mxu0 0.0
    %615 = vmatpush.xpose.msra.mxu0 0.0
    %616 = vmatpush.xpose.msra.mxu0 0.0
    %617 = vmatpush.xpose.msra.mxu0 0.0
    %618 = vmatpush.xpose.msra.mxu0 0.0
    %619 = vmatpush.xpose.msra.mxu0 0.0
    %620 = vmatpush.xpose.msra.mxu0 0.0
    %621 = vmatpush.xpose.msra.mxu0 0.0
    %622 = vmatpush.xpose.msra.mxu0 0.0
    %623 = vmatpush.xpose.msra.mxu0 0.0
    %624 = vmatpush.xpose.msra.mxu0 0.0
    %625 = vmatpush.xpose.msra.mxu0 0.0
    %626 = vmatpush.xpose.msra.mxu0 %v609
    %627 = vmatmul.f32.gmra.mxu0 %v607
    %v628 = vpop.f32.mrf.mxu0
    %v629 = vadd.f32 0.0, %v628
    %630 = vdwg.mxu0
    %v631 = vsel %vm159, %v629, -inf
    %632 = vmax.xlane.f32.xlu0 %v631
    %v633 = vpop.xlane.xlu0 %632
    %v634 = vsub.f32 %v629, %v633
    %v635 = vmul.f32 %v634, 1.442695
    %v636 = vpow.pop %v635
    %v637 = vsel %vm159, %v636, 0.0
    %638 = vadd.xlane.f32.xlu0 %v637
    %v639 = vpop.xlane.xlu0 %638
    %v640 = vrcp.pop %v639
    %v641 = vmul.f32 %v639, %v640
    %v642 = vsub.f32 1.0, %v641
    %v643 = vmul.f32 %v640, %v642
    %v644 = vadd.f32 %v640, %v643
    %vm645 = vweird.f32 %v639
    %vm646 = vweird.f32 %v640
    %vm647 = vmor %vm645, %vm646
    %v648 = vsel %vm647, %v640, %v644
    %v649 = vand.u32 2147483647, %v639
    %vm650 = vcmp.eq.f32.partialorder %v649, 8.507059e+37
    %v651 = vand.u32 %v639, 2147483648
    %v652 = vor.u32 1.1754944e-38, %v651
    %v653 = vsel %vm650, %v652, %v648
    %v654 = vmul.f32 %v636, %v653
    %655 = vrot.lane.b32.xlu0 %v129, 96
    %v656 = vpop.permute.xlu0 %655
    %v659 = vsel %vm159, %v654, 0
    %661 = vmatpush.msra.mxu0 0.0
    %662 = vmatpush.msra.mxu0 0.0
    %663 = vmatpush.msra.mxu0 0.0
    %664 = vmatpush.msra.mxu0 0.0
    %665 = vmatpush.msra.mxu0 0.0
    %666 = vmatpush.msra.mxu0 0.0
    %667 = vmatpush.msra.mxu0 0.0
    %668 = vmatpush.msra.mxu0 0.0
    %669 = vmatpush.msra.mxu0 0.0
    %670 = vmatpush.msra.mxu0 0.0
    %671 = vmatpush.msra.mxu0 0.0
    %672 = vmatpush.msra.mxu0 0.0
    %673 = vmatpush.msra.mxu0 0.0
    %674 = vmatpush.msra.mxu0 0.0
    %675 = vmatpush.msra.mxu0 0.0
    %676 = vmatpush.msra.mxu0 %v656
    %677 = vmatmul.f32.gmra.mxu0 %v659
    %v678 = vpop.f32.mrf.mxu0
    %v679 = vadd.f32 0.0, %v678
    %680 = vdwg.mxu0
    %v681 = vadd.f32 %v601, %v679
    %682 = vrot.lane.b32.xlu0 %v104, 116
    %v683 = vpop.permute.xlu0 %682
    %684 = vrot.lane.b32.xlu0 %v104, 100
    %v685 = vpop.permute.xlu0 %684
    %v686 = vsel %vm134, %v683, 0
    %v688 = vsel %vm134, %v685, 0
    %690 = vmatpush.xpose.msra.mxu0 0.0
    %691 = vmatpush.xpose.msra.mxu0 0.0
    %692 = vmatpush.xpose.msra.mxu0 0.0
    %693 = vmatpush.xpose.msra.mxu0 0.0
    %694 = vmatpush.xpose.msra.mxu0 0.0
    %695 = vmatpush.xpose.msra.mxu0 0.0
    %696 = vmatpush.xpose.msra.mxu0 0.0
    %697 = vmatpush.xpose.msra.mxu0 0.0
    %698 = vmatpush.xpose.msra.mxu0 0.0
    %699 = vmatpush.xpose.msra.mxu0 0.0
    %700 = vmatpush.xpose.msra.mxu0 0.0
    %701 = vmatpush.xpose.msra.mxu0 0.0
    %702 = vmatpush.xpose.msra.mxu0 0.0
    %703 = vmatpush.xpose.msra.mxu0 0.0
    %704 = vmatpush.xpose.msra.mxu0 0.0
    %705 = vmatpush.xpose.msra.mxu0 %v688
    %706 = vmatmul.f32.gmra.mxu0 %v686
    %v707 = vpop.f32.mrf.mxu0
    %v708 = vadd.f32 0.0, %v707
    %709 = vdwg.mxu0
    %v710 = vsel %vm159, %v708, -inf
    %711 = vmax.xlane.f32.xlu0 %v710
    %v712 = vpop.xlane.xlu0 %711
    %v713 = vsub.f32 %v708, %v712
    %v714 = vmul.f32 %v713, 1.442695
    %v715 = vpow.pop %v714
    %v716 = vsel %vm159, %v715, 0.0
    %717 = vadd.xlane.f32.xlu0 %v716
    %v718 = vpop.xlane.xlu0 %717
    %v719 = vrcp.pop %v718
    %v720 = vmul.f32 %v718, %v719
    %v721 = vsub.f32 1.0, %v720
    %v722 = vmul.f32 %v719, %v721
    %v723 = vadd.f32 %v719, %v722
    %vm724 = vweird.f32 %v718
    %vm725 = vweird.f32 %v719
    %vm726 = vmor %vm724, %vm725
    %v727 = vsel %vm726, %v719, %v723
    %v728 = vand.u32 2147483647, %v718
    %vm729 = vcmp.eq.f32.partialorder %v728, 8.507059e+37
    %v730 = vand.u32 %v718, 2147483648
    %v731 = vor.u32 1.1754944e-38, %v730
    %v732 = vsel %vm729, %v731, %v727
    %v733 = vmul.f32 %v715, %v732
    %734 = vrot.lane.b32.xlu0 %v129, 80
    %v735 = vpop.permute.xlu0 %734
    %v738 = vsel %vm159, %v733, 0
    %740 = vmatpush.msra.mxu0 0.0
    %741 = vmatpush.msra.mxu0 0.0
    %742 = vmatpush.msra.mxu0 0.0
    %743 = vmatpush.msra.mxu0 0.0
    %744 = vmatpush.msra.mxu0 0.0
    %745 = vmatpush.msra.mxu0 0.0
    %746 = vmatpush.msra.mxu0 0.0
    %747 = vmatpush.msra.mxu0 0.0
    %748 = vmatpush.msra.mxu0 0.0
    %749 = vmatpush.msra.mxu0 0.0
    %750 = vmatpush.msra.mxu0 0.0
    %751 = vmatpush.msra.mxu0 0.0
    %752 = vmatpush.msra.mxu0 0.0
    %753 = vmatpush.msra.mxu0 0.0
    %754 = vmatpush.msra.mxu0 0.0
    %755 = vmatpush.msra.mxu0 %v735
    %756 = vmatmul.f32.gmra.mxu0 %v738
    %v757 = vpop.f32.mrf.mxu0
    %v758 = vadd.f32 0.0, %v757
    %759 = vdwg.mxu0
    %v760 = vadd.f32 %v681, %v758
    %v761 = vld [vmem:[%s4] sm:$0x1]
    %v763 = vperm.slane %v761, 0
    %v765 = vadd.f32 %v760, %v763
    %766 = vst.msk [vmem:[#allocation8 + $0x8] sm:$0xff] %vm76, %v765
    // Predicated region
    $region34: #{tpu_custom_call.1} parent=1 // pred_check
      _
    $region35: #{tpu_custom_call.1} parent=1 // pred_check_branch
      %768 = sbr.rel (0) target = $region37
    $region36: #{tpu_custom_call.1} parent=1 // pred_region
      %770 = vsyncadd [#allocation4], 0
      %s771 = sshll.u32 [#allocation8], 4
      %s772 = int_to_ptr.vmem [resolvable:$true] %s771
      %s773 = sshll.u32 %s5, 4
      %s774 = int_to_ptr.hbm [resolvable:$true] %s773
      %779 = dma.vmem_to_hbm [thread:$0]  %s772, 256, %s774, [#allocation4], 128, 128, 8
    $region37: #{tpu_custom_call.1} parent=1 // pred_fallthru
      _
    // Predicated region
    $region38: #{tpu_custom_call.1} parent=1 // pred_check
      _
    $region39: #{tpu_custom_call.1} parent=1 // pred_check_branch
      %781 = sbr.rel (0) target = $region41
    $region40: #{tpu_custom_call.1} parent=1 // pred_region
      %783 = dma.done [#allocation4], 256
    $region41: #{tpu_custom_call.1} parent=1 // pred_fallthru
      _
    %784 = vsyncpa [#allocation3], 1
    %785 = vsyncpa [#allocation6], 1
    %786 = vsyncpa [#allocation4], 1

</llo_original>
